<compile_context>
chip_gen: v6e
topology: v6e:2x2x1
jax: 0.10.0
libtpu: 0.0.40
codegen_flags: <defaults>
</compile_context>

<pallas_src>
import numpy as np

import jax
import jax.numpy as jnp
from jax import lax
from jax.experimental import pallas as pl
from jax.experimental.pallas import tpu as pltpu


THRESH = 0.5   # sigmoid(x) > 0.5  <=>  x > 0 (used exactly; no sigmoid in-kernel)

_TILE_BUDGET_BYTES = 2 << 20      # target bytes for one buffered logits tile
_STEP_OVERHEAD_BYTES = 450_000    # ~0.35 us of HBM time per grid step
_SLAB_TARGET_ELEMS = 8192         # ~8 f32 vregs per elementwise intermediate
_LABELS_VMEM_CAP = 2 << 20        # load labels once if the whole array fits this


def _round_up(x, m):
    return (x + m - 1) // m * m


def _choose_batch_tiling(b8, row_cap, overhead_rows, pad_needed_anyway):
    """Pick (tile_rows, padded_rows) minimising streamed rows + step overhead."""
    row_cap = max(8, row_cap // 8 * 8)
    if b8 <= row_cap:
        return b8, b8
    # Candidate A: largest multiple of 8 <= row_cap that divides b8 (no row pad).
    div = 8
    t = row_cap
    while t >= 8:
        if b8 % t == 0:
            div = t
            break
        t -= 8
    # Candidate B: tile = row_cap, rows padded up to a tile multiple (pad copy).
    b_pad_b = _round_up(b8, row_cap)
    cost_a = b8 + (b8 // div) * overhead_rows
    if pad_needed_anyway:
        cost_a += 2 * b8                      # pad copy happens either way
    cost_b = b_pad_b + (b_pad_b // row_cap) * overhead_rows + (b8 + b_pad_b)
    if cost_a <= cost_b:
        return div, b8
    return row_cap, b_pad_b


@jax.jit
def set_criterion_pallas(src_logits, labels_padded):
    """src_logits: [B, C] float (any float dtype); labels_padded: [B, L] int32, -1 = pad."""
    B, C = src_logits.shape
    Bl, L = labels_padded.shape
    assert Bl == B and L >= 1

    C_pad = _round_up(C, 128)                 # lane-dense class dimension
    B8 = _round_up(max(B, 1), 8)
    itemsize = jnp.dtype(src_logits.dtype).itemsize
    row_bytes = C_pad * itemsize
    row_cap = max(8, (_TILE_BUDGET_BYTES // row_bytes) // 8 * 8)
    overhead_rows = max(8, _STEP_OVERHEAD_BYTES // row_bytes)
    pad_needed_anyway = (B8 != B) or (C_pad != C)

    TB, B_pad = _choose_batch_tiling(B8, row_cap, overhead_rows, pad_needed_anyway)
    num_tiles = B_pad // TB
    SLAB = max(8, min(TB, (_SLAB_TARGET_ELEMS // C_pad) // 8 * 8))
    n_full, rem = divmod(TB, SLAB)
    mask_rows = B_pad > B                     # padded rows exist -> mask in-kernel

    # Pad only when required; pad value is irrelevant (padded rows are masked
    # in-kernel, padded columns are sliced away in the combine).
    logits_p = src_logits
    labels_p = labels_padded
    if B_pad != B or C_pad != C:
        logits_p = jnp.pad(src_logits, ((0, B_pad - B), (0, C_pad - C)))
    if B_pad != B:
        labels_p = jnp.pad(labels_padded, ((0, B_pad - B), (0, 0)), constant_values=-1)

    labels_whole = (B_pad * 4 * _round_up(L, 128)) <= _LABELS_VMEM_CAP

    def kernel(logits_ref, labels_ref, bce_out_ref, cor_out_ref):
        tile_r0 = pl.program_id(0) * TB
        bce_out_ref[...] = jnp.zeros_like(bce_out_ref)
        cor_out_ref[...] = jnp.zeros_like(cor_out_ref)

        def slab(local_off, rows):
            x = logits_ref[pl.ds(local_off, rows), :].astype(jnp.float32)
            lab_off = (tile_r0 + local_off) if labels_whole else local_off
            labs = labels_ref[pl.ds(lab_off, rows), :]
            # One-hot target built in-register (L is tiny and static).
            col = lax.broadcasted_iota(jnp.int32, (rows, C_pad), 1)
            t_bool = labs[:, 0:1] == col
            for l in range(1, L):
                t_bool = jnp.logical_or(t_bool, labs[:, l:l + 1] == col)
            t = t_bool.astype(jnp.float32)
            # Numerically stable BCE-with-logits: max(x,0) - x*t + log1p(exp(-|x|)).
            bce = jnp.maximum(x, 0.0) - x * t + jnp.log1p(jnp.exp(-jnp.abs(x)))
            corr_b = (x > 0.0) == t_bool       # sigmoid(x) > 0.5  <=>  x > 0
            if mask_rows:
                row_id = lax.broadcasted_iota(jnp.int32, (rows, C_pad), 0)
                valid = (row_id + (tile_r0 + local_off)) < B
                bce = jnp.where(valid, bce, 0.0)
                corr_b = jnp.logical_and(corr_b, valid)
            corr = corr_b.astype(jnp.float32)
            # Fold rows into 8 sublanes with pure VALU adds; the cross-sublane
            # reduce happens once in the combine, not per tile.
            bce_out_ref[...] += bce.reshape(rows // 8, 8, C_pad).sum(axis=0)
            cor_out_ref[...] += corr.reshape(rows // 8, 8, C_pad).sum(axis=0)

        if n_full:
            def body(s, carry):
                slab(pl.multiple_of(s * SLAB, SLAB), SLAB)
                return carry
            lax.fori_loop(0, n_full, body, 0)
        if rem:
            slab(n_full * SLAB, rem)

    labels_spec = (pl.BlockSpec((B_pad, L), lambda i: (0, 0)) if labels_whole
                   else pl.BlockSpec((TB, L), lambda i: (i, 0)))

    logits_tile_bytes = 2 * TB * C_pad * itemsize            # double-buffered
    labels_bytes = (B_pad if labels_whole else 2 * TB) * 4 * _round_up(L, 128)
    out_bytes = 2 * 2 * 8 * C_pad * 4
    vmem_limit = int(min(64 << 20,
                         max(8 << 20,
                             2 * (logits_tile_bytes + labels_bytes + out_bytes)
                             + (2 << 20))))

    bce_parts, cor_parts = pl.pallas_call(
        kernel,
        out_shape=(jax.ShapeDtypeStruct((num_tiles * 8, C_pad), jnp.float32),
                   jax.ShapeDtypeStruct((num_tiles * 8, C_pad), jnp.float32)),
        grid=(num_tiles,),
        in_specs=[
            pl.BlockSpec((TB, C_pad), lambda i: (i, 0)),
            labels_spec,
        ],
        out_specs=(pl.BlockSpec((8, C_pad), lambda i: (i, 0)),
                   pl.BlockSpec((8, C_pad), lambda i: (i, 0))),
        compiler_params=pltpu.CompilerParams(
            dimension_semantics=("parallel",),
            vmem_limit_bytes=vmem_limit),
    )(logits_p, labels_p)

    # Tiny final combine (ordinary XLA; lets the grid stay "parallel" so v7x can
    # use both TensorCores).
    bce_class = bce_parts.reshape(num_tiles, 8, C_pad).sum(axis=(0, 1))   # (C_pad,)
    cor_class = cor_parts.reshape(num_tiles, 8, C_pad).sum(axis=(0, 1))
    loss_bce = jnp.sum(bce_class[:C]) / float(B * C)
    # NOTE: for C == 1 this is the mean of an empty slice (NaN), matching PyTorch.
    class_error = 100.0 - jnp.mean(cor_class[1:C] / float(B)) * 100.0
    return loss_bce, class_error


def pack_labels(targets):
    """Host-side glue: pack per-image label lists into a padded [B, L] int32 array.

    In a real training loop this belongs in the input pipeline so the step stays
    fully on-device (no per-step host sync).
    """
    B = len(targets)
    L = 1
    for tgt in targets:
        L = max(L, int(np.asarray(tgt["labels"]).size))
    labels_np = np.full((B, L), -1, dtype=np.int32)
    for i_t, tgt in enumerate(targets):
        lab = np.asarray(tgt["labels"], dtype=np.int32).reshape(-1)
        labels_np[i_t, : lab.shape[0]] = lab
    # TODO(synk): labels >= num_classes are silently ignored downstream; PyTorch's
    # scatter would raise an indexing error instead.
    return jnp.asarray(labels_np)


def set_criterion_forward(outputs, targets):
    """Mirrors SetCriterion.forward."""
    src_logits = outputs["service_pred_logits"]
    if src_logits.ndim == 3:
        src_logits = jnp.squeeze(src_logits, axis=2)
    labels = pack_labels(targets)
    loss_bce, class_error = set_criterion_pallas(src_logits, labels)
    return {"loss_bce_saclass": loss_bce, "class_error": class_error}


def _reference(src_logits, labels_padded):
    """Pure numpy reference matching the PyTorch module."""
    x = np.asarray(src_logits, dtype=np.float32)
    if x.ndim == 3:
        x = np.squeeze(x, axis=2)
    B, C = x.shape
    lab = np.asarray(labels_padded)
    t = np.zeros((B, C), np.float32)
    for i in range(B):
        for v in lab[i]:
            if v >= 0:
                t[i, int(v)] = 1.0
    bce = np.mean(np.maximum(x, 0.0) - x * t + np.log1p(np.exp(-np.abs(x))))
    pred = (1.0 / (1.0 + np.exp(-x)) > THRESH).astype(np.float32)
    acc = np.sum((pred == t).astype(np.float32), axis=0) / float(B)
    class_error = 100.0 - np.mean(acc[1:]) * 100.0
    return bce, class_error


if __name__ == "__main__":
    key = jax.random.PRNGKey(0)
    k1, k2, k3 = jax.random.split(key, 3)

    # --- Test 1: module-shaped path (batch=4, 8 service classes, [B, C, 1] logits) ---
    B, C = 4, 8
    logits = jax.random.normal(k1, (B, C, 1), dtype=jnp.float32)
    targets = [
        {"labels": jnp.array([1, 3], dtype=jnp.int32)},
        {"labels": jnp.array([0, 2, 5], dtype=jnp.int32)},
        {"labels": jnp.array([7], dtype=jnp.int32)},
        {"labels": jnp.array([2, 4, 6], dtype=jnp.int32)},
    ]
    outputs = {"service_pred_logits": logits}
    losses = set_criterion_forward(outputs, targets)
    jax.block_until_ready(losses)

    ref_bce, ref_err = _reference(logits, pack_labels(targets))
    assert jnp.allclose(losses["loss_bce_saclass"], ref_bce, atol=2e-5), (
        losses["loss_bce_saclass"], ref_bce)
    assert jnp.allclose(losses["class_error"], ref_err, atol=1e-3), (
        losses["class_error"], ref_err)

    # --- Test 2: ragged batch (B not multiple of 8), C not multiple of 128,
    #     multiple row slabs + tail, device-resident padded labels path. ---
    B2, C2, L2 = 203, 10, 4
    logits2 = jax.random.normal(k2, (B2, C2), dtype=jnp.float32)
    labels2 = jax.random.randint(k3, (B2, L2), -1, C2, dtype=jnp.int32)  # -1 = pad
    loss2, err2 = set_criterion_pallas(logits2, labels2)
    jax.block_until_ready((loss2, err2))

    ref_bce2, ref_err2 = _reference(logits2, labels2)
    assert jnp.allclose(loss2, ref_bce2, atol=2e-5), (loss2, ref_bce2)
    assert jnp.allclose(err2, ref_err2, atol=1e-3), (err2, ref_err2)

    print("KERNEL_OK")
</pallas_src>

<mosaic_0001>
module attributes {stable_mosaic.version = 11 : i64} {
  func.func @kernel(%arg0: i32, %arg1: memref<8x128xf32, #tpu.memory_space<vmem>>, %arg2: memref<8x3xi32, #tpu.memory_space<vmem>>, %arg3: memref<8x128xf32, #tpu.memory_space<vmem>>, %arg4: memref<8x128xf32, #tpu.memory_space<vmem>>) attributes {dimension_semantics = [#tpu.dimension_semantics<parallel>], iteration_bounds = array<i64: 1>, scalar_prefetch = 0 : i64, scratch_operands = 0 : i64, tpu.core_type = #tpu.core_type<tc>, window_params = [{transform_indices = @transform_0, window_bounds = array<i64: 8, 128>}, {pipeline_mode = #tpu.pipeline_mode<synchronous>, transform_indices = @transform_1, window_bounds = array<i64: 8, 3>}, {transform_indices = @transform_2, window_bounds = array<i64: 8, 128>}, {transform_indices = @transform_3, window_bounds = array<i64: 8, 128>}]} {
    %c8_i32 = arith.constant 8 : i32
    %0 = arith.muli %arg0, %c8_i32 : i32
    %cst = arith.constant 0.000000e+00 : f32
    %1 = vector.broadcast %cst : f32 to vector<8x128xf32>
    %c0 = arith.constant 0 : index
    %c0_0 = arith.constant 0 : index
    %2 = vector.load %arg3[%c0, %c0_0] : memref<8x128xf32, #tpu.memory_space<vmem>>, vector<8x128xf32>
    tpu.vector_store %arg3[%c0, %c0_0], %1 {strides = array<i32>} : memref<8x128xf32, #tpu.memory_space<vmem>>, vector<8x128xf32>,
    %cst_1 = arith.constant 0.000000e+00 : f32
    %3 = vector.broadcast %cst_1 : f32 to vector<8x128xf32>
    %c0_2 = arith.constant 0 : index
    %c0_3 = arith.constant 0 : index
    %4 = vector.load %arg4[%c0_2, %c0_3] : memref<8x128xf32, #tpu.memory_space<vmem>>, vector<8x128xf32>
    tpu.vector_store %arg4[%c0_2, %c0_3], %3 {strides = array<i32>} : memref<8x128xf32, #tpu.memory_space<vmem>>, vector<8x128xf32>,
    %c0_i32 = arith.constant 0 : i32
    %c8_i32_4 = arith.constant 8 : i32
    %5 = arith.muli %c0_i32, %c8_i32_4 : i32
    %6 = tpu.assume_multiple %5, 8 : i32
    %7 = arith.index_cast %6 : i32 to index
    %c0_5 = arith.constant 0 : index
    %8 = vector.load %arg1[%7, %c0_5] : memref<8x128xf32, #tpu.memory_space<vmem>>, vector<8x128xf32>
    %9 = arith.addi %0, %6 : i32
    %10 = arith.index_cast %9 : i32 to index
    %c0_6 = arith.constant 0 : index
    %11 = vector.load %arg2[%10, %c0_6] : memref<8x3xi32, #tpu.memory_space<vmem>>, vector<8x3xi32>
    %12 = tpu.iota {dimensions = array<i32: 1>} : vector<8x128xi32>
    %13 = vector.extract_strided_slice %11 {offsets = [0, 0], sizes = [8, 1], strides = [1, 1]} : vector<8x3xi32> to vector<8x1xi32>
    %14 = vector.broadcast %13 : vector<8x1xi32> to vector<8x128xi32>
    %15 = arith.cmpi eq, %14, %12 : vector<8x128xi32>
    %16 = vector.extract_strided_slice %11 {offsets = [0, 1], sizes = [8, 1], strides = [1, 1]} : vector<8x3xi32> to vector<8x1xi32>
    %17 = vector.broadcast %16 : vector<8x1xi32> to vector<8x128xi32>
    %18 = arith.cmpi eq, %17, %12 : vector<8x128xi32>
    %19 = arith.ori %15, %18 : vector<8x128xi1>
    %20 = vector.extract_strided_slice %11 {offsets = [0, 2], sizes = [8, 1], strides = [1, 1]} : vector<8x3xi32> to vector<8x1xi32>
    %21 = vector.broadcast %20 : vector<8x1xi32> to vector<8x128xi32>
    %22 = arith.cmpi eq, %21, %12 : vector<8x128xi32>
    %23 = arith.ori %19, %22 : vector<8x128xi1>
    %24 = arith.extui %23 : vector<8x128xi1> to vector<8x128xi32>
    %25 = arith.sitofp %24 : vector<8x128xi32> to vector<8x128xf32>
    %cst_7 = arith.constant 0.000000e+00 : f32
    %26 = vector.broadcast %cst_7 : f32 to vector<8x128xf32>
    %27 = arith.maximumf %8, %26 : vector<8x128xf32>
    %28 = arith.mulf %8, %25 : vector<8x128xf32>
    %29 = arith.subf %27, %28 : vector<8x128xf32>
    %30 = math.absf %8 : vector<8x128xf32>
    %cst_8 = arith.constant 0.000000e+00 : f32
    %31 = vector.broadcast %cst_8 : f32 to vector<8x128xf32>
    %32 = arith.subf %31, %30 : vector<8x128xf32>
    %33 = math.exp %32 : vector<8x128xf32>
    %34 = math.log1p %33 : vector<8x128xf32>
    %35 = arith.addf %29, %34 : vector<8x128xf32>
    %cst_9 = arith.constant 0.000000e+00 : f32
    %36 = vector.broadcast %cst_9 : f32 to vector<8x128xf32>
    %37 = arith.cmpf ogt, %8, %36 : vector<8x128xf32>
    %38 = arith.xori %37, %23 : vector<8x128xi1>
    %cst_10 = arith.constant dense<true> : vector<8x128xi1>
    %39 = arith.xori %38, %cst_10 : vector<8x128xi1>
    %40 = tpu.iota {dimensions = array<i32: 0>} : vector<8x128xi32>
    %41 = arith.addi %0, %6 : i32
    %42 = vector.broadcast %41 : i32 to vector<8x128xi32>
    %43 = arith.addi %40, %42 : vector<8x128xi32>
    %c4_i32 = arith.constant 4 : i32
    %44 = vector.broadcast %c4_i32 : i32 to vector<8x128xi32>
    %45 = arith.cmpi slt, %43, %44 : vector<8x128xi32>
    %cst_11 = arith.constant 0.000000e+00 : f32
    %46 = vector.broadcast %cst_11 : f32 to vector<8x128xf32>
    %47 = arith.select %45, %35, %46 : vector<8x128xi1>, vector<8x128xf32>
    %48 = arith.andi %39, %45 : vector<8x128xi1>
    %49 = arith.extui %48 : vector<8x128xi1> to vector<8x128xi32>
    %50 = arith.sitofp %49 : vector<8x128xi32> to vector<8x128xf32>
    %c0_12 = arith.constant 0 : index
    %c0_13 = arith.constant 0 : index
    %51 = vector.load %arg3[%c0_12, %c0_13] : memref<8x128xf32, #tpu.memory_space<vmem>>, vector<8x128xf32>
    %52 = vector.shape_cast %47 : vector<8x128xf32> to vector<1x8x128xf32>
    %cst_14 = arith.constant dense<0.000000e+00> : vector<8x128xf32>
    %53 = vector.multi_reduction <add>, %52, %cst_14 [0] : vector<1x8x128xf32> to vector<8x128xf32>
    %54 = arith.addf %51, %53 : vector<8x128xf32>
    %c0_15 = arith.constant 0 : index
    %c0_16 = arith.constant 0 : index
    %55 = vector.load %arg3[%c0_15, %c0_16] : memref<8x128xf32, #tpu.memory_space<vmem>>, vector<8x128xf32>
    tpu.vector_store %arg3[%c0_15, %c0_16], %54 {strides = array<i32>} : memref<8x128xf32, #tpu.memory_space<vmem>>, vector<8x128xf32>,
    %c0_17 = arith.constant 0 : index
    %c0_18 = arith.constant 0 : index
    %56 = vector.load %arg4[%c0_17, %c0_18] : memref<8x128xf32, #tpu.memory_space<vmem>>, vector<8x128xf32>
    %57 = vector.shape_cast %50 : vector<8x128xf32> to vector<1x8x128xf32>
    %cst_19 = arith.constant dense<0.000000e+00> : vector<8x128xf32>
    %58 = vector.multi_reduction <add>, %57, %cst_19 [0] : vector<1x8x128xf32> to vector<8x128xf32>
    %59 = arith.addf %56, %58 : vector<8x128xf32>
    %c0_20 = arith.constant 0 : index
    %c0_21 = arith.constant 0 : index
    %60 = vector.load %arg4[%c0_20, %c0_21] : memref<8x128xf32, #tpu.memory_space<vmem>>, vector<8x128xf32>
    tpu.vector_store %arg4[%c0_20, %c0_21], %59 {strides = array<i32>} : memref<8x128xf32, #tpu.memory_space<vmem>>, vector<8x128xf32>,
    %c1_i32 = arith.constant 1 : i32
    return
  }
  func.func @transform_0(%arg0: i32) -> (i32, i32) {
    %c0_i32 = arith.constant 0 : i32
    %c0_i32_0 = arith.constant 0 : i32
    return %arg0, %c0_i32 : i32, i32
  }
  func.func @transform_1(%arg0: i32) -> (i32, i32) {
    %c0_i32 = arith.constant 0 : i32
    %c0_i32_0 = arith.constant 0 : i32
    %c0_i32_1 = arith.constant 0 : i32
    return %c0_i32, %c0_i32_0 : i32, i32
  }
  func.func @transform_2(%arg0: i32) -> (i32, i32) {
    %c0_i32 = arith.constant 0 : i32
    %c0_i32_0 = arith.constant 0 : i32
    return %arg0, %c0_i32 : i32, i32
  }
  func.func @transform_3(%arg0: i32) -> (i32, i32) {
    %c0_i32 = arith.constant 0 : i32
    %c0_i32_0 = arith.constant 0 : i32
    return %arg0, %c0_i32 : i32, i32
  }
}

</mosaic_0001>

<llo_original>
// kernel: set_criterion_pallas.1
$region0: #{set_criterion_pallas.1}
  #allocation0 [shape = 'u32[]', space=smem, size = 0x4, offset = 0x4, fixed_abs, tag = 'smem constant byte address 0x4 - core index']
  #allocation1 [shape = 'u32[144,128]{1,0:T(1,128)}', space=vmem, size = 0x12000, scoped, tag = 'internal scratch']
  %s0 = inlined_call_operand.vmem [shape: f32[8,128], index: 0, kind: input, shape index: {}]
  %s1 = inlined_call_operand.vmem [shape: s32[8,3], index: 1, kind: input, shape index: {}]
  %s2 = inlined_call_operand.vmem [shape: f32[8,128], index: 2, kind: output, shape index: {0}]
  %s3 = inlined_call_operand.vmem [shape: f32[8,128], index: 3, kind: output, shape index: {1}]
  %4 = xla_tuple %s2, %s3
  %s5 = sld [smem:[#allocation0]]
  $region26: #{set_criterion_pallas.1} parent=0
    _
  %s7 = ssub.s32 1, %s5
  %s8 = scalar_select 0, %s7, %s5
  // Predicated region
  $region2: #{set_criterion_pallas.1} parent=0 // pred_check
    _
  $region3: #{set_criterion_pallas.1} parent=0 // pred_check_branch
    %10 = sbr.rel (0) target = $region5
  $region4: #{set_criterion_pallas.1} parent=0 // pred_region
    _
  $region5: #{set_criterion_pallas.1} parent=0 // pred_fallthru
    _
  // Predicated region
  $region6: #{set_criterion_pallas.1} parent=0 // pred_check
    _
  $region7: #{set_criterion_pallas.1} parent=0 // pred_check_branch
    %12 = sbr.rel (0) target = $region9
  $region8: #{set_criterion_pallas.1} parent=0 // pred_region
    _
  $region9: #{set_criterion_pallas.1} parent=0 // pred_fallthru
    _
  %s13 = smul.u32 0, 8
  %14 = vst [vmem:[%s2] sm:$0xff] 0.0
  %15 = vst [vmem:[%s3] sm:$0xff] 0.0
  %v16 = vld [vmem:[%s0] sm:$0xff]
  %s17 = sadd.s32 %s13, 0
  %s18 = scalar_lea.vmem %s1, %s17
  %v19 = vld [vmem:[%s18] sm:$0xff]
  %v20 = vlaneseq
  %v21 = vand.u32 %v20, 127
  %22 = vset.pattern.permute.xlu0 0
  %23 = vperm.xlu0 %22, %v19
  %v24 = vpop.permute.xlu0 %23
  %vm25 = vcmp.eq.s32.totalorder %v24, %v21
  %26 = vset.pattern.permute.xlu0 1
  %27 = vperm.xlu0 %26, %v19
  %v28 = vpop.permute.xlu0 %27
  %vm29 = vcmp.eq.s32.totalorder %v28, %v21
  %vm30 = vmor %vm25, %vm29
  %31 = vset.pattern.permute.xlu0 2
  %32 = vperm.xlu0 %31, %v19
  %v33 = vpop.permute.xlu0 %32
  %vm34 = vcmp.eq.s32.totalorder %v33, %v21
  %vm35 = vmor %vm30, %vm34
  %v36 = vsel %vm35, 1, 0
  %v37 = vcvt.s32.f32 %v36
  %v38 = vmax.f32 %v16, 0.0
  %v39 = vmul.f32 %v16, %v37
  %v40 = vsub.f32 %v38, %v39
  %v41 = vand.u32 2147483647, %v16
  %v42 = vsub.f32 0.0, %v41
  %v43 = vmul.f32 %v42, 1.442695
  %v44 = vpow.pop %v43
  %v45 = vadd.f32 %v44, 1.0
  %v46 = vlog2.pop %v45
  %v47 = vmul.f32 %v46, 0.6931472
  %v48 = vmul.f32 -0.5, %v44
  %v49 = vadd.f32 %v48, 1.0
  %v50 = vmul.f32 %v49, %v44
  %v51 = vand.u32 2147483647, %v44
  %vm52 = vcmp.lt.f32.partialorder %v51, 0.0004427343
  %v53 = vsel %vm52, %v50, %v47
  %v54 = vadd.f32 %v40, %v53
  %vm55 = vcmp.gt.f32.partialorder %v16, 0.0
  %vm56 = vmxor %vm55, %vm35
  %vm57 = vmxor %vm56, 1
  %v58 = vlaneseq
  %v59 = vshrl.u32 %v58, 7
  %v60 = vstv %s17
  %v61 = vadd.s32 %v59, %v60
  %vm62 = vcmp.lt.s32.totalorder %v61, 4
  %v63 = vsel %vm62, %v54, 0.0
  %vm64 = vmand %vm57, %vm62
  %v65 = vsel %vm64, 1, 0
  %v66 = vcvt.s32.f32 %v65
  %v67 = vld [vmem:[%s2] sm:$0xff]
  %v68 = vadd.f32 %v63, 0.0
  %v69 = vadd.f32 %v67, %v68
  %70 = vst [vmem:[%s2] sm:$0xff] %v69
  %v71 = vld [vmem:[%s3] sm:$0xff]
  %v72 = vadd.f32 %v66, 0.0
  %v73 = vadd.f32 %v71, %v72
  %74 = vst [vmem:[%s3] sm:$0xff] %v73
  // Predicated region
  $region10: #{set_criterion_pallas.1} parent=0 // pred_check
    _
  $region11: #{set_criterion_pallas.1} parent=0 // pred_check_branch
    %76 = sbr.rel (0) target = $region13
  $region12: #{set_criterion_pallas.1} parent=0 // pred_region
    _
  $region13: #{set_criterion_pallas.1} parent=0 // pred_fallthru
    _
  // Predicated region
  $region14: #{set_criterion_pallas.1} parent=0 // pred_check
    _
  $region15: #{set_criterion_pallas.1} parent=0 // pred_check_branch
    %78 = sbr.rel (0) target = $region17
  $region16: #{set_criterion_pallas.1} parent=0 // pred_region
    _
  $region17: #{set_criterion_pallas.1} parent=0 // pred_fallthru
    _
  // Predicated region
  $region18: #{set_criterion_pallas.1} parent=0 // pred_check
    _
  $region19: #{set_criterion_pallas.1} parent=0 // pred_check_branch
    %80 = sbr.rel (0) target = $region21
  $region20: #{set_criterion_pallas.1} parent=0 // pred_region
    _
  $region21: #{set_criterion_pallas.1} parent=0 // pred_fallthru
    _
  // Predicated region
  $region22: #{set_criterion_pallas.1} parent=0 // pred_check
    _
  $region23: #{set_criterion_pallas.1} parent=0 // pred_check_branch
    %82 = sbr.rel (0) target = $region25
  $region24: #{set_criterion_pallas.1} parent=0 // pred_region
    _
  $region25: #{set_criterion_pallas.1} parent=0 // pred_fallthru
    _

</llo_original>
